<compile_context>
chip_gen: v6e
topology: v6e:2x2x1
jax: 0.10.0
libtpu: 0.0.40
codegen_flags: <defaults>
</compile_context>

<pallas_src>
import functools

import jax
import jax.numpy as jnp
from jax.experimental import pallas as pl
from jax.experimental.pallas import tpu as pltpu

_MIB = 1024 * 1024


def mlp_kernel(x_ref, w1_ref, b1_ref, w2_ref, b2_ref,
               w3_ref, b3_ref, w4_ref, b4_ref, o_ref):
    cdt = w1_ref.dtype  # MXU operand dtype (f32 or bf16); accumulation is f32
    # Layer 1: Linear(input_dim, 128) + ReLU   (Dropout = identity in eval)
    # x is cast in-kernel (VPU, hidden under DMA) -- no wrapper-side cast pass.
    h = jnp.dot(x_ref[...].astype(cdt), w1_ref[...],
                preferred_element_type=jnp.float32)
    h = jnp.maximum(h + b1_ref[...], 0.0)
    # Layer 2: Linear(128, 64) + ReLU
    h = jnp.dot(h.astype(cdt), w2_ref[...], preferred_element_type=jnp.float32)
    h = jnp.maximum(h + b2_ref[...], 0.0)
    # Layer 3: Linear(64, 32) + ReLU
    h = jnp.dot(h.astype(cdt), w3_ref[...], preferred_element_type=jnp.float32)
    h = jnp.maximum(h + b3_ref[...], 0.0)
    # Layer 4: Linear(32, num_classes)  (logits, no activation)
    out = jnp.dot(h.astype(cdt), w4_ref[...], preferred_element_type=jnp.float32)
    o_ref[...] = (out + b4_ref[...]).astype(o_ref.dtype)


def _round_up(x, m):
    return ((x + m - 1) // m) * m


def _vmem_capacity_bytes():
    try:
        return int(pltpu.get_tpu_info().vmem_capacity_bytes)
    except Exception:
        return 64 * _MIB  # conservative fallback (v7x per-TC VMEM)


def _choose_tile(B, input_dim, num_classes, x_itemsize, cdt_itemsize,
                 block_b, vmem_limit_bytes):
    """Pick the batch tile (rows per grid step)."""
    lane_in = max(_round_up(input_dim, 128), 128)     # x block is lane-padded in VMEM
    lane_out = max(_round_up(num_classes, 128), 128)  # output block is lane-padded too
    # Rough per-row VMEM bytes: double-buffered x block, double-buffered output
    # block, plus lane-padded f32 + compute-dtype intermediates (h1/h2/h3).
    per_row = (2 * lane_in * x_itemsize
               + 2 * lane_out * 4
               + 3 * 128 * 4
               + 3 * 128 * cdt_itemsize)
    budget = vmem_limit_bytes // 2                    # ~2x headroom vs. estimate
    tb = max((budget // per_row) // 16 * 16, 16)
    tb = min(tb, 8192)                                # review-recommended ceiling
    if block_b is not None:
        tb = min(tb, max(_round_up(block_b, 16), 16))
    # Keep >= 2 grid steps when B allows it so v7x's two TensorCores both work.
    tb = min(tb, max(_round_up(pl.cdiv(B, 2), 16), 16))
    if tb >= B:
        tb = B   # single block == full array dim (always a legal block shape)
    return tb


@functools.partial(jax.jit, static_argnames=("block_b", "compute_dtype"))
def mlp_classifier_forward(x, params, *, block_b=None,
                           compute_dtype=jnp.float32):
    """Fused 4-layer MLP forward, batch-tiled over a 1-D (ragged) grid.

    x: (B, input_dim).  `compute_dtype` controls the MXU operand dtype
    (float32 or bfloat16 -- bf16 recommended on v5e); accumulation, bias-add
    and ReLU are always float32.  `block_b=None` auto-sizes the batch tile
    from the VMEM budget.
    """
    (w1, b1, w2, b2, w3, b3, w4, b4) = params
    B, input_dim = x.shape
    num_classes = w4.shape[1]
    h1, h2, h3 = w1.shape[1], w2.shape[1], w3.shape[1]

    vmem_cap = _vmem_capacity_bytes()
    vmem_limit = int(min(0.75 * vmem_cap, 96 * _MIB))

    cdt_bytes = jnp.dtype(compute_dtype).itemsize
    tb = _choose_tile(B, input_dim, num_classes, x.dtype.itemsize, cdt_bytes,
                      block_b, vmem_limit)
    grid = (pl.cdiv(B, tb),)   # ragged last tile: rows independent, OOB writes dropped

    # Weights are tiny (~58 KiB) -- casting them here is negligible traffic.
    w1c, w2c, w3c, w4c = (w.astype(compute_dtype) for w in (w1, w2, w3, w4))

    def const_spec(shape):
        # Whole (small) array as one block, resident in VMEM across all steps.
        return pl.BlockSpec(shape, lambda i: (0,) * len(shape))

    x_spec = pl.BlockSpec((tb, input_dim), lambda i: (i, 0))
    out_spec = pl.BlockSpec((tb, num_classes), lambda i: (i, 0))

    flops = 2 * B * (input_dim * h1 + h1 * h2 + h2 * h3 + h3 * num_classes)
    weight_bytes = sum(int(w.size) * cdt_bytes for w in (w1c, w2c, w3c, w4c))
    bias_bytes = sum(int(b.size) * 4 for b in (b1, b2, b3, b4))
    bytes_accessed = (B * input_dim * x.dtype.itemsize   # stream x in
                      + B * num_classes * 4              # stream logits out
                      + weight_bytes + bias_bytes)

    return pl.pallas_call(
        mlp_kernel,
        out_shape=jax.ShapeDtypeStruct((B, num_classes), jnp.float32),
        grid=grid,
        in_specs=[
            x_spec,
            const_spec(w1c.shape), const_spec(b1.shape),
            const_spec(w2c.shape), const_spec(b2.shape),
            const_spec(w3c.shape), const_spec(b3.shape),
            const_spec(w4c.shape), const_spec(b4.shape),
        ],
        out_specs=out_spec,
        compiler_params=pltpu.CompilerParams(
            dimension_semantics=("parallel",),
            vmem_limit_bytes=vmem_limit),
        cost_estimate=pl.CostEstimate(
            flops=int(flops), transcendentals=0,
            bytes_accessed=int(bytes_accessed)),
    )(x, w1c, b1, w2c, b2, w3c, b3, w4c, b4)


def init_params(key, input_dim, num_classes):
    """Deterministic init mirroring PyTorch Linear default (U(-1/sqrt(fan_in), +))."""
    dims = [(input_dim, 128), (128, 64), (64, 32), (32, num_classes)]
    params = []
    for (fan_in, fan_out) in dims:
        key, kw, kb = jax.random.split(key, 3)
        bound = 1.0 / (fan_in ** 0.5)
        w = jax.random.uniform(kw, (fan_in, fan_out), jnp.float32, -bound, bound)
        b = jax.random.uniform(kb, (1, fan_out), jnp.float32, -bound, bound)
        params.extend([w, b])
    return tuple(params)


def reference_forward(x, params, compute_dtype=jnp.float32):
    (w1, b1, w2, b2, w3, b3, w4, b4) = params
    cd = compute_dtype
    h = jnp.dot(x.astype(cd), w1.astype(cd), preferred_element_type=jnp.float32)
    h = jnp.maximum(h + b1, 0.0)
    h = jnp.dot(h.astype(cd), w2.astype(cd), preferred_element_type=jnp.float32)
    h = jnp.maximum(h + b2, 0.0)
    h = jnp.dot(h.astype(cd), w3.astype(cd), preferred_element_type=jnp.float32)
    h = jnp.maximum(h + b3, 0.0)
    out = jnp.dot(h.astype(cd), w4.astype(cd), preferred_element_type=jnp.float32)
    return out + b4


if __name__ == "__main__":
    key = jax.random.PRNGKey(0)
    batch = 8
    input_dim = 32
    num_classes = 10

    key, kx, kp = jax.random.split(key, 3)
    x = jax.random.normal(kx, (batch, input_dim), jnp.float32)
    params = init_params(kp, input_dim, num_classes)

    # f32 path (exact vs reference), single-block grid.
    out_f32 = jax.block_until_ready(
        mlp_classifier_forward(x, params, compute_dtype=jnp.float32))
    ref_f32 = reference_forward(x, params, jnp.float32)
    assert out_f32.shape == (batch, num_classes)
    assert jnp.allclose(out_f32, ref_f32, atol=1e-4, rtol=1e-4), \
        "f32 mismatch vs JAX reference"

    # bf16-operand path (f32 accumulate) -- x cast happens inside the kernel.
    out_bf16 = jax.block_until_ready(
        mlp_classifier_forward(x, params, compute_dtype=jnp.bfloat16))
    ref_bf16 = reference_forward(x, params, jnp.bfloat16)
    assert jnp.allclose(out_bf16, ref_bf16, atol=2e-2, rtol=2e-2), \
        "bf16 mismatch vs JAX reference"

    # Ragged multi-step grid (no padding): B=40 with a tiny 16-row tile ->
    # grid of 3 steps, last tile has 8 valid rows.
    key, kx2 = jax.random.split(key)
    x2 = jax.random.normal(kx2, (40, input_dim), jnp.float32)
    out2 = jax.block_until_ready(
        mlp_classifier_forward(x2, params, block_b=16,
                               compute_dtype=jnp.float32))
    ref2 = reference_forward(x2, params, jnp.float32)
    assert out2.shape == (40, num_classes)
    assert jnp.allclose(out2, ref2, atol=1e-4, rtol=1e-4), \
        "ragged tiled-grid mismatch vs JAX reference"

    # Auto-sized tile path: B=300 -> tile capped at round_up(150,16)=160,
    # 2 grid steps (exercises the >=2-step v7x split) with a ragged tail.
    key, kx3 = jax.random.split(key)
    x3 = jax.random.normal(kx3, (300, input_dim), jnp.float32)
    out3 = jax.block_until_ready(
        mlp_classifier_forward(x3, params, compute_dtype=jnp.float32))
    ref3 = reference_forward(x3, params, jnp.float32)
    assert out3.shape == (300, num_classes)
    assert jnp.allclose(out3, ref3, atol=1e-4, rtol=1e-4), \
        "auto-tile mismatch vs JAX reference"

    print("KERNEL_OK")
</pallas_src>

<mosaic_0001>
module attributes {stable_mosaic.version = 11 : i64} {
  func.func @mlp_kernel(%arg0: i32, %arg1: memref<8x32xf32, #tpu.memory_space<vmem>>, %arg2: memref<32x128xf32, #tpu.memory_space<vmem>>, %arg3: memref<1x128xf32, #tpu.memory_space<vmem>>, %arg4: memref<128x64xf32, #tpu.memory_space<vmem>>, %arg5: memref<1x64xf32, #tpu.memory_space<vmem>>, %arg6: memref<64x32xf32, #tpu.memory_space<vmem>>, %arg7: memref<1x32xf32, #tpu.memory_space<vmem>>, %arg8: memref<32x10xf32, #tpu.memory_space<vmem>>, %arg9: memref<1x10xf32, #tpu.memory_space<vmem>>, %arg10: memref<8x10xf32, #tpu.memory_space<vmem>>) attributes {dimension_semantics = [#tpu.dimension_semantics<parallel>], iteration_bounds = array<i64: 1>, scalar_prefetch = 0 : i64, scratch_operands = 0 : i64, tpu.core_type = #tpu.core_type<tc>, window_params = [{transform_indices = @transform_0, window_bounds = array<i64: 8, 32>}, {pipeline_mode = #tpu.pipeline_mode<synchronous>, transform_indices = @transform_1, window_bounds = array<i64: 32, 128>}, {pipeline_mode = #tpu.pipeline_mode<synchronous>, transform_indices = @transform_2, window_bounds = array<i64: 1, 128>}, {pipeline_mode = #tpu.pipeline_mode<synchronous>, transform_indices = @transform_3, window_bounds = array<i64: 128, 64>}, {pipeline_mode = #tpu.pipeline_mode<synchronous>, transform_indices = @transform_4, window_bounds = array<i64: 1, 64>}, {pipeline_mode = #tpu.pipeline_mode<synchronous>, transform_indices = @transform_5, window_bounds = array<i64: 64, 32>}, {pipeline_mode = #tpu.pipeline_mode<synchronous>, transform_indices = @transform_6, window_bounds = array<i64: 1, 32>}, {pipeline_mode = #tpu.pipeline_mode<synchronous>, transform_indices = @transform_7, window_bounds = array<i64: 32, 10>}, {pipeline_mode = #tpu.pipeline_mode<synchronous>, transform_indices = @transform_8, window_bounds = array<i64: 1, 10>}, {transform_indices = @transform_9, window_bounds = array<i64: 8, 10>}]} {
    %c0 = arith.constant 0 : index
    %c0_0 = arith.constant 0 : index
    %0 = vector.load %arg1[%c0, %c0_0] : memref<8x32xf32, #tpu.memory_space<vmem>>, vector<8x32xf32>
    %c0_1 = arith.constant 0 : index
    %c0_2 = arith.constant 0 : index
    %1 = vector.load %arg2[%c0_1, %c0_2] : memref<32x128xf32, #tpu.memory_space<vmem>>, vector<32x128xf32>
    %cst = arith.constant dense<0.000000e+00> : vector<8x128xf32>
    %2 = tpu.matmul %0, %1, %cst {dimension_numbers = #tpu.dot_dimension_numbers<[1], [0], [0], [1], [0, 0, 1, 1], [], []>} : vector<8x32xf32>, vector<32x128xf32>, vector<8x128xf32> -> vector<8x128xf32>
    %c0_3 = arith.constant 0 : index
    %c0_4 = arith.constant 0 : index
    %3 = vector.load %arg3[%c0_3, %c0_4] : memref<1x128xf32, #tpu.memory_space<vmem>>, vector<1x128xf32>
    %4 = vector.broadcast %3 : vector<1x128xf32> to vector<8x128xf32>
    %5 = arith.addf %2, %4 : vector<8x128xf32>
    %cst_5 = arith.constant 0.000000e+00 : f32
    %6 = vector.broadcast %cst_5 : f32 to vector<8x128xf32>
    %7 = arith.maximumf %5, %6 : vector<8x128xf32>
    %c0_6 = arith.constant 0 : index
    %c0_7 = arith.constant 0 : index
    %8 = vector.load %arg4[%c0_6, %c0_7] : memref<128x64xf32, #tpu.memory_space<vmem>>, vector<128x64xf32>
    %cst_8 = arith.constant dense<0.000000e+00> : vector<8x64xf32>
    %9 = tpu.matmul %7, %8, %cst_8 {dimension_numbers = #tpu.dot_dimension_numbers<[1], [0], [0], [1], [0, 0, 1, 1], [], []>} : vector<8x128xf32>, vector<128x64xf32>, vector<8x64xf32> -> vector<8x64xf32>
    %c0_9 = arith.constant 0 : index
    %c0_10 = arith.constant 0 : index
    %10 = vector.load %arg5[%c0_9, %c0_10] : memref<1x64xf32, #tpu.memory_space<vmem>>, vector<1x64xf32>
    %11 = vector.broadcast %10 : vector<1x64xf32> to vector<8x64xf32>
    %12 = arith.addf %9, %11 : vector<8x64xf32>
    %cst_11 = arith.constant 0.000000e+00 : f32
    %13 = vector.broadcast %cst_11 : f32 to vector<8x64xf32>
    %14 = arith.maximumf %12, %13 : vector<8x64xf32>
    %c0_12 = arith.constant 0 : index
    %c0_13 = arith.constant 0 : index
    %15 = vector.load %arg6[%c0_12, %c0_13] : memref<64x32xf32, #tpu.memory_space<vmem>>, vector<64x32xf32>
    %cst_14 = arith.constant dense<0.000000e+00> : vector<8x32xf32>
    %16 = tpu.matmul %14, %15, %cst_14 {dimension_numbers = #tpu.dot_dimension_numbers<[1], [0], [0], [1], [0, 0, 1, 1], [], []>} : vector<8x64xf32>, vector<64x32xf32>, vector<8x32xf32> -> vector<8x32xf32>
    %c0_15 = arith.constant 0 : index
    %c0_16 = arith.constant 0 : index
    %17 = vector.load %arg7[%c0_15, %c0_16] : memref<1x32xf32, #tpu.memory_space<vmem>>, vector<1x32xf32>
    %18 = vector.broadcast %17 : vector<1x32xf32> to vector<8x32xf32>
    %19 = arith.addf %16, %18 : vector<8x32xf32>
    %cst_17 = arith.constant 0.000000e+00 : f32
    %20 = vector.broadcast %cst_17 : f32 to vector<8x32xf32>
    %21 = arith.maximumf %19, %20 : vector<8x32xf32>
    %c0_18 = arith.constant 0 : index
    %c0_19 = arith.constant 0 : index
    %22 = vector.load %arg8[%c0_18, %c0_19] : memref<32x10xf32, #tpu.memory_space<vmem>>, vector<32x10xf32>
    %cst_20 = arith.constant dense<0.000000e+00> : vector<8x10xf32>
    %23 = tpu.matmul %21, %22, %cst_20 {dimension_numbers = #tpu.dot_dimension_numbers<[1], [0], [0], [1], [0, 0, 1, 1], [], []>} : vector<8x32xf32>, vector<32x10xf32>, vector<8x10xf32> -> vector<8x10xf32>
    %c0_21 = arith.constant 0 : index
    %c0_22 = arith.constant 0 : index
    %24 = vector.load %arg9[%c0_21, %c0_22] : memref<1x10xf32, #tpu.memory_space<vmem>>, vector<1x10xf32>
    %25 = vector.broadcast %24 : vector<1x10xf32> to vector<8x10xf32>
    %26 = arith.addf %23, %25 : vector<8x10xf32>
    %c0_23 = arith.constant 0 : index
    %c0_24 = arith.constant 0 : index
    %27 = vector.load %arg10[%c0_23, %c0_24] : memref<8x10xf32, #tpu.memory_space<vmem>>, vector<8x10xf32>
    tpu.vector_store %arg10[%c0_23, %c0_24], %26 {strides = array<i32>} : memref<8x10xf32, #tpu.memory_space<vmem>>, vector<8x10xf32>,
    return
  }
  func.func @transform_0(%arg0: i32) -> (i32, i32) {
    %c0_i32 = arith.constant 0 : i32
    %c0_i32_0 = arith.constant 0 : i32
    return %arg0, %c0_i32 : i32, i32
  }
  func.func @transform_1(%arg0: i32) -> (i32, i32) {
    %c0_i32 = arith.constant 0 : i32
    %c0_i32_0 = arith.constant 0 : i32
    %c0_i32_1 = arith.constant 0 : i32
    return %c0_i32, %c0_i32_0 : i32, i32
  }
  func.func @transform_2(%arg0: i32) -> (i32, i32) {
    %c0_i32 = arith.constant 0 : i32
    %c0_i32_0 = arith.constant 0 : i32
    %c0_i32_1 = arith.constant 0 : i32
    return %c0_i32, %c0_i32_0 : i32, i32
  }
  func.func @transform_3(%arg0: i32) -> (i32, i32) {
    %c0_i32 = arith.constant 0 : i32
    %c0_i32_0 = arith.constant 0 : i32
    %c0_i32_1 = arith.constant 0 : i32
    return %c0_i32, %c0_i32_0 : i32, i32
  }
  func.func @transform_4(%arg0: i32) -> (i32, i32) {
    %c0_i32 = arith.constant 0 : i32
    %c0_i32_0 = arith.constant 0 : i32
    %c0_i32_1 = arith.constant 0 : i32
    return %c0_i32, %c0_i32_0 : i32, i32
  }
  func.func @transform_5(%arg0: i32) -> (i32, i32) {
    %c0_i32 = arith.constant 0 : i32
    %c0_i32_0 = arith.constant 0 : i32
    %c0_i32_1 = arith.constant 0 : i32
    return %c0_i32, %c0_i32_0 : i32, i32
  }
  func.func @transform_6(%arg0: i32) -> (i32, i32) {
    %c0_i32 = arith.constant 0 : i32
    %c0_i32_0 = arith.constant 0 : i32
    %c0_i32_1 = arith.constant 0 : i32
    return %c0_i32, %c0_i32_0 : i32, i32
  }
  func.func @transform_7(%arg0: i32) -> (i32, i32) {
    %c0_i32 = arith.constant 0 : i32
    %c0_i32_0 = arith.constant 0 : i32
    %c0_i32_1 = arith.constant 0 : i32
    return %c0_i32, %c0_i32_0 : i32, i32
  }
  func.func @transform_8(%arg0: i32) -> (i32, i32) {
    %c0_i32 = arith.constant 0 : i32
    %c0_i32_0 = arith.constant 0 : i32
    %c0_i32_1 = arith.constant 0 : i32
    return %c0_i32, %c0_i32_0 : i32, i32
  }
  func.func @transform_9(%arg0: i32) -> (i32, i32) {
    %c0_i32 = arith.constant 0 : i32
    %c0_i32_0 = arith.constant 0 : i32
    return %arg0, %c0_i32 : i32, i32
  }
}

</mosaic_0001>

<llo_original>
// kernel: mlp_classifier_forward.1
$region0: #{mlp_classifier_forward.1}
  #allocation0 [shape = 'u32[]', space=smem, size = 0x4, offset = 0x4, fixed_abs, tag = 'smem constant byte address 0x4 - core index']
  #allocation1 [shape = 'u32[144,128]{1,0:T(1,128)}', space=vmem, size = 0x12000, scoped, tag = 'internal scratch']
  %s0 = inlined_call_operand.vmem [shape: f32[8,32], index: 0, kind: input, shape index: {}]
  %s1 = inlined_call_operand.vmem [shape: f32[32,128], index: 1, kind: input, shape index: {}]
  %s2 = inlined_call_operand.vmem [shape: f32[1,128], index: 2, kind: input, shape index: {}]
  %s3 = inlined_call_operand.vmem [shape: f32[128,64], index: 3, kind: input, shape index: {}]
  %s4 = inlined_call_operand.vmem [shape: f32[1,64], index: 4, kind: input, shape index: {}]
  %s5 = inlined_call_operand.vmem [shape: f32[64,32], index: 5, kind: input, shape index: {}]
  %s6 = inlined_call_operand.vmem [shape: f32[1,32], index: 6, kind: input, shape index: {}]
  %s7 = inlined_call_operand.vmem [shape: f32[32,10], index: 7, kind: input, shape index: {}]
  %s8 = inlined_call_operand.vmem [shape: f32[1,10], index: 8, kind: input, shape index: {}]
  %s9 = inlined_call_operand.hbm [shape: f32[8,10], index: 9, kind: output, shape index: {}]
  %s10 = sld [smem:[#allocation0]]
  $region46: #{mlp_classifier_forward.1} parent=0
    _
  %s12 = ssub.s32 1, %s10
  %s13 = scalar_select 0, %s12, %s10
  $region1: #{mlp_classifier_forward.1} parent=0
    #allocation2 [shape = 'u8[4096]{0}', space=vmem, size = 0x1000, scoped, tag = 'output window, operand 0, single buffered']
    #allocation3 [shape = 's32[1]{0}', space=sflag, size = 0x4, scoped, tag = 'scoped memory for mlp_classifier_forward.1']
    %14 = vsyncpa [#allocation3], 0
    // Predicated region
    $region2: #{mlp_classifier_forward.1} parent=1 // pred_check
      _
    $region3: #{mlp_classifier_forward.1} parent=1 // pred_check_branch
      %16 = sbr.rel (0) target = $region5
    $region4: #{mlp_classifier_forward.1} parent=1 // pred_region
      _
    $region5: #{mlp_classifier_forward.1} parent=1 // pred_fallthru
      _
    // Predicated region
    $region6: #{mlp_classifier_forward.1} parent=1 // pred_check
      _
    $region7: #{mlp_classifier_forward.1} parent=1 // pred_check_branch
      %18 = sbr.rel (0) target = $region9
    $region8: #{mlp_classifier_forward.1} parent=1 // pred_region
      _
    $region9: #{mlp_classifier_forward.1} parent=1 // pred_fallthru
      _
    // Predicated region
    $region10: #{mlp_classifier_forward.1} parent=1 // pred_check
      _
    $region11: #{mlp_classifier_forward.1} parent=1 // pred_check_branch
      %20 = sbr.rel (0) target = $region13
    $region12: #{mlp_classifier_forward.1} parent=1 // pred_region
      _
    $region13: #{mlp_classifier_forward.1} parent=1 // pred_fallthru
      _
    // Predicated region
    $region14: #{mlp_classifier_forward.1} parent=1 // pred_check
      _
    $region15: #{mlp_classifier_forward.1} parent=1 // pred_check_branch
      %22 = sbr.rel (0) target = $region17
    $region16: #{mlp_classifier_forward.1} parent=1 // pred_region
      _
    $region17: #{mlp_classifier_forward.1} parent=1 // pred_fallthru
      _
    // Predicated region
    $region18: #{mlp_classifier_forward.1} parent=1 // pred_check
      _
    $region19: #{mlp_classifier_forward.1} parent=1 // pred_check_branch
      %24 = sbr.rel (0) target = $region21
    $region20: #{mlp_classifier_forward.1} parent=1 // pred_region
      _
    $region21: #{mlp_classifier_forward.1} parent=1 // pred_fallthru
      _
    // Predicated region
    $region22: #{mlp_classifier_forward.1} parent=1 // pred_check
      _
    $region23: #{mlp_classifier_forward.1} parent=1 // pred_check_branch
      %26 = sbr.rel (0) target = $region25
    $region24: #{mlp_classifier_forward.1} parent=1 // pred_region
      _
    $region25: #{mlp_classifier_forward.1} parent=1 // pred_fallthru
      _
    // Predicated region
    $region26: #{mlp_classifier_forward.1} parent=1 // pred_check
      _
    $region27: #{mlp_classifier_forward.1} parent=1 // pred_check_branch
      %28 = sbr.rel (0) target = $region29
    $region28: #{mlp_classifier_forward.1} parent=1 // pred_region
      _
    $region29: #{mlp_classifier_forward.1} parent=1 // pred_fallthru
      _
    // Predicated region
    $region30: #{mlp_classifier_forward.1} parent=1 // pred_check
      _
    $region31: #{mlp_classifier_forward.1} parent=1 // pred_check_branch
      %30 = sbr.rel (0) target = $region33
    $region32: #{mlp_classifier_forward.1} parent=1 // pred_region
      _
    $region33: #{mlp_classifier_forward.1} parent=1 // pred_fallthru
      _
    // Predicated region
    $region34: #{mlp_classifier_forward.1} parent=1 // pred_check
      _
    $region35: #{mlp_classifier_forward.1} parent=1 // pred_check_branch
      %32 = sbr.rel (0) target = $region37
    $region36: #{mlp_classifier_forward.1} parent=1 // pred_region
      _
    $region37: #{mlp_classifier_forward.1} parent=1 // pred_fallthru
      _
    %v33 = vld [vmem:[%s0] sm:$0xff]
    %v34 = vld [vmem:[%s1] sm:$0xff]
    %v35 = vld [vmem:[%s1 + $0x8] sm:$0xff]
    %v36 = vld [vmem:[%s1 + $0x10] sm:$0xff]
    %v37 = vld [vmem:[%s1 + $0x18] sm:$0xff]
    %v38 = vld [vmem:[%s2] sm:$0x1]
    %v40 = vlaneseq
    %v41 = vshrl.u32 %v40, 7
    %v42 = vsub.s32 0, %v41
    %v43 = vrot.slane %v38, %v42
    %vm45 = vcmask 261120
    %v47 = vsel %vm45, %v33, 0
    %49 = vmatprep.subr.mxu0 0.0
    %50 = vmatpush1.msra.mxu0 0.0
    %51 = vmatprep.subr.mxu0 0.0
    %52 = vmatpush1.msra.mxu0 0.0
    %53 = vmatprep.subr.mxu0 0.0
    %54 = vmatpush1.msra.mxu0 0.0
    %55 = vmatprep.subr.mxu0 0.0
    %56 = vmatpush1.msra.mxu0 0.0
    %57 = vmatprep.subr.mxu0 0.0
    %58 = vmatpush1.msra.mxu0 0.0
    %59 = vmatprep.subr.mxu0 0.0
    %60 = vmatpush1.msra.mxu0 0.0
    %61 = vmatprep.subr.mxu0 0.0
    %62 = vmatpush1.msra.mxu0 0.0
    %63 = vmatprep.subr.mxu0 0.0
    %64 = vmatpush1.msra.mxu0 0.0
    %65 = vmatprep.subr.mxu0 0.0
    %66 = vmatpush1.msra.mxu0 0.0
    %67 = vmatprep.subr.mxu0 0.0
    %68 = vmatpush1.msra.mxu0 0.0
    %69 = vmatprep.subr.mxu0 0.0
    %70 = vmatpush1.msra.mxu0 0.0
    %71 = vmatprep.subr.mxu0 0.0
    %72 = vmatpush1.msra.mxu0 0.0
    %73 = vmatprep.subr.mxu0 0.0
    %74 = vmatpush1.msra.mxu0 %v37
    %75 = vmatprep.subr.mxu0 0.0
    %76 = vmatpush1.msra.mxu0 %v36
    %77 = vmatprep.subr.mxu0 0.0
    %78 = vmatpush1.msra.mxu0 %v35
    %79 = vmatprep.subr.mxu0 0.0
    %80 = vmatpush1.msra.mxu0 %v34
    %81 = vmatprep.subr.mxu0 0.0
    %82 = vmatpush2.msra.mxu0 0.0
    %83 = vmatprep.subr.mxu0 0.0
    %84 = vmatpush2.msra.mxu0 0.0
    %85 = vmatprep.subr.mxu0 0.0
    %86 = vmatpush2.msra.mxu0 0.0
    %87 = vmatprep.subr.mxu0 0.0
    %88 = vmatpush2.msra.mxu0 0.0
    %89 = vmatprep.subr.mxu0 0.0
    %90 = vmatpush2.msra.mxu0 0.0
    %91 = vmatprep.subr.mxu0 0.0
    %92 = vmatpush2.msra.mxu0 0.0
    %93 = vmatprep.subr.mxu0 0.0
    %94 = vmatpush2.msra.mxu0 0.0
    %95 = vmatprep.subr.mxu0 0.0
    %96 = vmatpush2.msra.mxu0 0.0
    %97 = vmatprep.subr.mxu0 0.0
    %98 = vmatpush2.msra.mxu0 0.0
    %99 = vmatprep.subr.mxu0 0.0
    %100 = vmatpush2.msra.mxu0 0.0
    %101 = vmatprep.subr.mxu0 0.0
    %102 = vmatpush2.msra.mxu0 0.0
    %103 = vmatprep.subr.mxu0 0.0
    %104 = vmatpush2.msra.mxu0 0.0
    %105 = vmatprep.subr.mxu0 0.0
    %106 = vmatpush2.msra.mxu0 0.0
    %107 = vmatprep.subr.mxu0 0.0
    %108 = vmatpush2.msra.mxu0 0.0
    %109 = vmatprep.subr.mxu0 0.0
    %110 = vmatpush2.msra.mxu0 0.0
    %111 = vmatprep.subr.mxu0 0.0
    %112 = vmatpush2.msra.mxu0 0.0
    %113 = vmatprep.mubr.f32.mxu0 0.0
    %114 = vmatmul.mubr.f32.gmra.mxu0 %v47
    %v115 = vpop.f32.mrf.mxu0
    %v116 = vadd.f32 %v43, %v115
    %v117 = vpop.f32.mrf.mxu0
    %118 = vdwg.mxu0
    %v119 = vmax.f32 %v116, 0.0
    %v120 = vld [vmem:[%s3] sm:$0xff]
    %v121 = vld [vmem:[%s3 + $0x8] sm:$0xff]
    %v122 = vld [vmem:[%s3 + $0x10] sm:$0xff]
    %v123 = vld [vmem:[%s3 + $0x18] sm:$0xff]
    %v124 = vld [vmem:[%s3 + $0x20] sm:$0xff]
    %v125 = vld [vmem:[%s3 + $0x28] sm:$0xff]
    %v126 = vld [vmem:[%s3 + $0x30] sm:$0xff]
    %v127 = vld [vmem:[%s3 + $0x38] sm:$0xff]
    %v128 = vld [vmem:[%s3 + $0x40] sm:$0xff]
    %v129 = vld [vmem:[%s3 + $0x48] sm:$0xff]
    %v130 = vld [vmem:[%s3 + $0x50] sm:$0xff]
    %v131 = vld [vmem:[%s3 + $0x58] sm:$0xff]
    %v132 = vld [vmem:[%s3 + $0x60] sm:$0xff]
    %v133 = vld [vmem:[%s3 + $0x68] sm:$0xff]
    %v134 = vld [vmem:[%s3 + $0x70] sm:$0xff]
    %v135 = vld [vmem:[%s3 + $0x78] sm:$0xff]
    %v136 = vld [vmem:[%s4] sm:$0x1]
    %v138 = vlaneseq
    %v139 = vshrl.u32 %v138, 7
    %v140 = vsub.s32 0, %v139
    %v141 = vrot.slane %v136, %v140
    %143 = vmatprep.subr.mxu0 0.0
    %144 = vmatpush1.msra.mxu0 %v135
    %145 = vmatprep.subr.mxu0 0.0
    %146 = vmatpush1.msra.mxu0 %v134
    %147 = vmatprep.subr.mxu0 0.0
    %148 = vmatpush1.msra.mxu0 %v133
    %149 = vmatprep.subr.mxu0 0.0
    %150 = vmatpush1.msra.mxu0 %v132
    %151 = vmatprep.subr.mxu0 0.0
    %152 = vmatpush1.msra.mxu0 %v131
    %153 = vmatprep.subr.mxu0 0.0
    %154 = vmatpush1.msra.mxu0 %v130
    %155 = vmatprep.subr.mxu0 0.0
    %156 = vmatpush1.msra.mxu0 %v129
    %157 = vmatprep.subr.mxu0 0.0
    %158 = vmatpush1.msra.mxu0 %v128
    %159 = vmatprep.subr.mxu0 0.0
    %160 = vmatpush1.msra.mxu0 %v127
    %161 = vmatprep.subr.mxu0 0.0
    %162 = vmatpush1.msra.mxu0 %v126
    %163 = vmatprep.subr.mxu0 0.0
    %164 = vmatpush1.msra.mxu0 %v125
    %165 = vmatprep.subr.mxu0 0.0
    %166 = vmatpush1.msra.mxu0 %v124
    %167 = vmatprep.subr.mxu0 0.0
    %168 = vmatpush1.msra.mxu0 %v123
    %169 = vmatprep.subr.mxu0 0.0
    %170 = vmatpush1.msra.mxu0 %v122
    %171 = vmatprep.subr.mxu0 0.0
    %172 = vmatpush1.msra.mxu0 %v121
    %173 = vmatprep.subr.mxu0 0.0
    %174 = vmatpush1.msra.mxu0 %v120
    %175 = vmatprep.subr.mxu0 0.0
    %176 = vmatpush2.msra.mxu0 0.0
    %177 = vmatprep.subr.mxu0 0.0
    %178 = vmatpush2.msra.mxu0 0.0
    %179 = vmatprep.subr.mxu0 0.0
    %180 = vmatpush2.msra.mxu0 0.0
    %181 = vmatprep.subr.mxu0 0.0
    %182 = vmatpush2.msra.mxu0 0.0
    %183 = vmatprep.subr.mxu0 0.0
    %184 = vmatpush2.msra.mxu0 0.0
    %185 = vmatprep.subr.mxu0 0.0
    %186 = vmatpush2.msra.mxu0 0.0
    %187 = vmatprep.subr.mxu0 0.0
    %188 = vmatpush2.msra.mxu0 0.0
    %189 = vmatprep.subr.mxu0 0.0
    %190 = vmatpush2.msra.mxu0 0.0
    %191 = vmatprep.subr.mxu0 0.0
    %192 = vmatpush2.msra.mxu0 0.0
    %193 = vmatprep.subr.mxu0 0.0
    %194 = vmatpush2.msra.mxu0 0.0
    %195 = vmatprep.subr.mxu0 0.0
    %196 = vmatpush2.msra.mxu0 0.0
    %197 = vmatprep.subr.mxu0 0.0
    %198 = vmatpush2.msra.mxu0 0.0
    %199 = vmatprep.subr.mxu0 0.0
    %200 = vmatpush2.msra.mxu0 0.0
    %201 = vmatprep.subr.mxu0 0.0
    %202 = vmatpush2.msra.mxu0 0.0
    %203 = vmatprep.subr.mxu0 0.0
    %204 = vmatpush2.msra.mxu0 0.0
    %205 = vmatprep.subr.mxu0 0.0
    %206 = vmatpush2.msra.mxu0 0.0
    %207 = vmatprep.mubr.f32.mxu0 0.0
    %208 = vmatmul.mubr.f32.gmra.mxu0 %v119
    %v209 = vpop.f32.mrf.mxu0
    %v210 = vadd.f32 %v141, %v209
    %v211 = vpop.f32.mrf.mxu0
    %212 = vdwg.mxu0
    %v213 = vmax.f32 %v210, 0.0
    %v214 = vld [vmem:[%s5] sm:$0xff]
    %v215 = vld [vmem:[%s5 + $0x8] sm:$0xff]
    %v216 = vld [vmem:[%s5 + $0x10] sm:$0xff]
    %v217 = vld [vmem:[%s5 + $0x18] sm:$0xff]
    %v218 = vld [vmem:[%s5 + $0x20] sm:$0xff]
    %v219 = vld [vmem:[%s5 + $0x28] sm:$0xff]
    %v220 = vld [vmem:[%s5 + $0x30] sm:$0xff]
    %v221 = vld [vmem:[%s5 + $0x38] sm:$0xff]
    %v222 = vld [vmem:[%s6] sm:$0x1]
    %v224 = vlaneseq
    %v225 = vshrl.u32 %v224, 7
    %v226 = vsub.s32 0, %v225
    %v227 = vrot.slane %v222, %v226
    %vm229 = vcmask 523264
    %v231 = vsel %vm229, %v213, 0
    %233 = vmatprep.subr.mxu0 0.0
    %234 = vmatpush1.msra.mxu0 0.0
    %235 = vmatprep.subr.mxu0 0.0
    %236 = vmatpush1.msra.mxu0 0.0
    %237 = vmatprep.subr.mxu0 0.0
    %238 = vmatpush1.msra.mxu0 0.0
    %239 = vmatprep.subr.mxu0 0.0
    %240 = vmatpush1.msra.mxu0 0.0
    %241 = vmatprep.subr.mxu0 0.0
    %242 = vmatpush1.msra.mxu0 0.0
    %243 = vmatprep.subr.mxu0 0.0
    %244 = vmatpush1.msra.mxu0 0.0
    %245 = vmatprep.subr.mxu0 0.0
    %246 = vmatpush1.msra.mxu0 0.0
    %247 = vmatprep.subr.mxu0 0.0
    %248 = vmatpush1.msra.mxu0 0.0
    %249 = vmatprep.subr.mxu0 0.0
    %250 = vmatpush1.msra.mxu0 %v221
    %251 = vmatprep.subr.mxu0 0.0
    %252 = vmatpush1.msra.mxu0 %v220
    %253 = vmatprep.subr.mxu0 0.0
    %254 = vmatpush1.msra.mxu0 %v219
    %255 = vmatprep.subr.mxu0 0.0
    %256 = vmatpush1.msra.mxu0 %v218
    %257 = vmatprep.subr.mxu0 0.0
    %258 = vmatpush1.msra.mxu0 %v217
    %259 = vmatprep.subr.mxu0 0.0
    %260 = vmatpush1.msra.mxu0 %v216
    %261 = vmatprep.subr.mxu0 0.0
    %262 = vmatpush1.msra.mxu0 %v215
    %263 = vmatprep.subr.mxu0 0.0
    %264 = vmatpush1.msra.mxu0 %v214
    %265 = vmatprep.subr.mxu0 0.0
    %266 = vmatpush2.msra.mxu0 0.0
    %267 = vmatprep.subr.mxu0 0.0
    %268 = vmatpush2.msra.mxu0 0.0
    %269 = vmatprep.subr.mxu0 0.0
    %270 = vmatpush2.msra.mxu0 0.0
    %271 = vmatprep.subr.mxu0 0.0
    %272 = vmatpush2.msra.mxu0 0.0
    %273 = vmatprep.subr.mxu0 0.0
    %274 = vmatpush2.msra.mxu0 0.0
    %275 = vmatprep.subr.mxu0 0.0
    %276 = vmatpush2.msra.mxu0 0.0
    %277 = vmatprep.subr.mxu0 0.0
    %278 = vmatpush2.msra.mxu0 0.0
    %279 = vmatprep.subr.mxu0 0.0
    %280 = vmatpush2.msra.mxu0 0.0
    %281 = vmatprep.subr.mxu0 0.0
    %282 = vmatpush2.msra.mxu0 0.0
    %283 = vmatprep.subr.mxu0 0.0
    %284 = vmatpush2.msra.mxu0 0.0
    %285 = vmatprep.subr.mxu0 0.0
    %286 = vmatpush2.msra.mxu0 0.0
    %287 = vmatprep.subr.mxu0 0.0
    %288 = vmatpush2.msra.mxu0 0.0
    %289 = vmatprep.subr.mxu0 0.0
    %290 = vmatpush2.msra.mxu0 0.0
    %291 = vmatprep.subr.mxu0 0.0
    %292 = vmatpush2.msra.mxu0 0.0
    %293 = vmatprep.subr.mxu0 0.0
    %294 = vmatpush2.msra.mxu0 0.0
    %295 = vmatprep.subr.mxu0 0.0
    %296 = vmatpush2.msra.mxu0 0.0
    %297 = vmatprep.mubr.f32.mxu0 0.0
    %298 = vmatmul.mubr.f32.gmra.mxu0 %v231
    %v299 = vpop.f32.mrf.mxu0
    %v300 = vadd.f32 %v227, %v299
    %v301 = vpop.f32.mrf.mxu0
    %302 = vdwg.mxu0
    %v303 = vmax.f32 %v300, 0.0
    %v304 = vld [vmem:[%s7] sm:$0xff]
    %v305 = vld [vmem:[%s7 + $0x8] sm:$0xff]
    %v306 = vld [vmem:[%s7 + $0x10] sm:$0xff]
    %v307 = vld [vmem:[%s7 + $0x18] sm:$0xff]
    %v308 = vld [vmem:[%s8] sm:$0x1]
    %v310 = vlaneseq
    %v311 = vshrl.u32 %v310, 7
    %v312 = vsub.s32 0, %v311
    %v313 = vrot.slane %v308, %v312
    %v316 = vsel %vm45, %v303, 0
    %318 = vmatprep.subr.mxu0 0.0
    %319 = vmatpush1.msra.mxu0 0.0
    %320 = vmatprep.subr.mxu0 0.0
    %321 = vmatpush1.msra.mxu0 0.0
    %322 = vmatprep.subr.mxu0 0.0
    %323 = vmatpush1.msra.mxu0 0.0
    %324 = vmatprep.subr.mxu0 0.0
    %325 = vmatpush1.msra.mxu0 0.0
    %326 = vmatprep.subr.mxu0 0.0
    %327 = vmatpush1.msra.mxu0 0.0
    %328 = vmatprep.subr.mxu0 0.0
    %329 = vmatpush1.msra.mxu0 0.0
    %330 = vmatprep.subr.mxu0 0.0
    %331 = vmatpush1.msra.mxu0 0.0
    %332 = vmatprep.subr.mxu0 0.0
    %333 = vmatpush1.msra.mxu0 0.0
    %334 = vmatprep.subr.mxu0 0.0
    %335 = vmatpush1.msra.mxu0 0.0
    %336 = vmatprep.subr.mxu0 0.0
    %337 = vmatpush1.msra.mxu0 0.0
    %338 = vmatprep.subr.mxu0 0.0
    %339 = vmatpush1.msra.mxu0 0.0
    %340 = vmatprep.subr.mxu0 0.0
    %341 = vmatpush1.msra.mxu0 0.0
    %342 = vmatprep.subr.mxu0 0.0
    %343 = vmatpush1.msra.mxu0 %v307
    %344 = vmatprep.subr.mxu0 0.0
    %345 = vmatpush1.msra.mxu0 %v306
    %346 = vmatprep.subr.mxu0 0.0
    %347 = vmatpush1.msra.mxu0 %v305
    %348 = vmatprep.subr.mxu0 0.0
    %349 = vmatpush1.msra.mxu0 %v304
    %350 = vmatprep.subr.mxu0 0.0
    %351 = vmatpush2.msra.mxu0 0.0
    %352 = vmatprep.subr.mxu0 0.0
    %353 = vmatpush2.msra.mxu0 0.0
    %354 = vmatprep.subr.mxu0 0.0
    %355 = vmatpush2.msra.mxu0 0.0
    %356 = vmatprep.subr.mxu0 0.0
    %357 = vmatpush2.msra.mxu0 0.0
    %358 = vmatprep.subr.mxu0 0.0
    %359 = vmatpush2.msra.mxu0 0.0
    %360 = vmatprep.subr.mxu0 0.0
    %361 = vmatpush2.msra.mxu0 0.0
    %362 = vmatprep.subr.mxu0 0.0
    %363 = vmatpush2.msra.mxu0 0.0
    %364 = vmatprep.subr.mxu0 0.0
    %365 = vmatpush2.msra.mxu0 0.0
    %366 = vmatprep.subr.mxu0 0.0
    %367 = vmatpush2.msra.mxu0 0.0
    %368 = vmatprep.subr.mxu0 0.0
    %369 = vmatpush2.msra.mxu0 0.0
    %370 = vmatprep.subr.mxu0 0.0
    %371 = vmatpush2.msra.mxu0 0.0
    %372 = vmatprep.subr.mxu0 0.0
    %373 = vmatpush2.msra.mxu0 0.0
    %374 = vmatprep.subr.mxu0 0.0
    %375 = vmatpush2.msra.mxu0 0.0
    %376 = vmatprep.subr.mxu0 0.0
    %377 = vmatpush2.msra.mxu0 0.0
    %378 = vmatprep.subr.mxu0 0.0
    %379 = vmatpush2.msra.mxu0 0.0
    %380 = vmatprep.subr.mxu0 0.0
    %381 = vmatpush2.msra.mxu0 0.0
    %382 = vmatprep.mubr.f32.mxu0 0.0
    %383 = vmatmul.mubr.f32.gmra.mxu0 %v316
    %v384 = vpop.f32.mrf.mxu0
    %v385 = vadd.f32 %v313, %v384
    %v386 = vpop.f32.mrf.mxu0
    %387 = vdwg.mxu0
    %vm388 = vcmask 80896
    %389 = vst.msk [vmem:[#allocation2] sm:$0xff] %vm388, %v385
    // Predicated region
    $region38: #{mlp_classifier_forward.1} parent=1 // pred_check
      _
    $region39: #{mlp_classifier_forward.1} parent=1 // pred_check_branch
      %391 = sbr.rel (0) target = $region41
    $region40: #{mlp_classifier_forward.1} parent=1 // pred_region
      %s393 = ssub.s32 128, 128
      %394 = vsyncadd [#allocation3], %s393
      %s396 = sshll.u32 [#allocation2], 4
      %s397 = int_to_ptr.vmem [resolvable:$true] %s396
      %399 = dma.vmem_to_hbm [thread:$0]  %s397, 128, %s9, [#allocation3]
    $region41: #{mlp_classifier_forward.1} parent=1 // pred_fallthru
      _
    // Predicated region
    $region42: #{mlp_classifier_forward.1} parent=1 // pred_check
      _
    $region43: #{mlp_classifier_forward.1} parent=1 // pred_check_branch
      %401 = sbr.rel (0) target = $region45
    $region44: #{mlp_classifier_forward.1} parent=1 // pred_region
      %402 = dma.done [#allocation3], 128
    $region45: #{mlp_classifier_forward.1} parent=1 // pred_fallthru
      _
    %403 = vsyncpa [#allocation3], 1

</llo_original>
